<compile_context>
chip_gen: v7x
topology: tpu7x:2x2x1
jax: 0.10.0
libtpu: 0.0.40
codegen_flags: <defaults>
</compile_context>

<pallas_src>
import functools

import jax
import jax.numpy as jnp
import numpy as np
from jax.experimental import pallas as pl
from jax.experimental.pallas import tpu as pltpu


# ----------------------------------------------------------------------------
# Pallas kernel
# ----------------------------------------------------------------------------
def _loc_enc_kernel(lat_ref, lon_ref, w_lat_ref, w_lon_ref, phase_ref, out_ref,
                    *, scale: float):
    # lat_ref / lon_ref : (TB, 1)          VMEM
    # w_*_ref, phase_ref: (1, embed_dim)   VMEM (broadcast rows)
    # out_ref           : (TB, embed_dim)  VMEM
    ang = (lat_ref[...] * w_lat_ref[...]
           + lon_ref[...] * w_lon_ref[...]
           + phase_ref[...])                       # (TB, embed_dim), VPU only
    emb = jnp.sin(ang)                             # single EUP pass
    if scale != 1.0:                               # static: dropped when scale==1
        emb = jnp.float32(scale) * emb
    out_ref[...] = emb                             # one full-width lane-dense store


# ----------------------------------------------------------------------------
# Parameter setup (plain JAX / NumPy glue)
# ----------------------------------------------------------------------------
def _make_omega(embed_dim_part: int) -> np.ndarray:
    # Matches _get_1d_sincos_embed_from_grid_torch frequency construction.
    assert embed_dim_part % 2 == 0
    half = embed_dim_part // 2
    omega = np.arange(half, dtype=np.float32) / (embed_dim_part / 2.0)
    return (1.0 / (10000.0 ** omega)).astype(np.float32)          # (half,)


def _round_up(x: int, m: int) -> int:
    return ((x + m - 1) // m) * m


def location_encoder(location_coords: jnp.ndarray,
                     embed_dim: int,
                     trainable_scale: bool = False,
                     scale: float | None = None) -> jnp.ndarray:
    """JAX/Pallas equivalent of LocationEncoder.forward.

    location_coords: (B, 2) float32 lat/lon.
    returns: (B, 1, embed_dim) float32.
    """
    B = location_coords.shape[0]
    lat_embed_dim = embed_dim // 2
    lon_embed_dim = embed_dim - lat_embed_dim
    assert lat_embed_dim % 2 == 0 and lon_embed_dim % 2 == 0, \
        "embed_dim must split into even lat/lon halves (embed_dim % 4 == 0)"
    half_lat = lat_embed_dim // 2
    half_lon = lon_embed_dim // 2

    # Fused frequency / phase rows (shape (1, embed_dim)), layout matching the
    # PyTorch concat order: [sin(lat), cos(lat), sin(lon), cos(lon)].
    omega_lat = _make_omega(lat_embed_dim)
    omega_lon = _make_omega(lon_embed_dim)
    w_lat = np.concatenate(
        [omega_lat, omega_lat, np.zeros(2 * half_lon, np.float32)])
    w_lon = np.concatenate(
        [np.zeros(2 * half_lat, np.float32), omega_lon, omega_lon])
    phase = np.concatenate(
        [np.zeros(half_lat, np.float32),
         np.full(half_lat, np.pi / 2, np.float32),
         np.zeros(half_lon, np.float32),
         np.full(half_lon, np.pi / 2, np.float32)])
    w_lat = jnp.asarray(w_lat, jnp.float32).reshape(1, embed_dim)
    w_lon = jnp.asarray(w_lon, jnp.float32).reshape(1, embed_dim)
    phase = jnp.asarray(phase, jnp.float32).reshape(1, embed_dim)

    # Module init values: nn.Parameter(0.1) if trainable else ones(1) buffer.
    # TODO(synk): a trained `scale` checkpoint value should be threaded in here
    # (we bake it as a trace-time constant; fine for deterministic-init parity).
    scale_val = float(scale) if scale is not None else (0.1 if trainable_scale else 1.0)

    coords = location_coords.astype(jnp.float32)
    lat = coords[:, 0:1]                            # (B, 1) — free XLA slice
    lon = coords[:, 1:2]                            # (B, 1)

    # Grid over batch.  TB multiple of 8; capped so tiles stay a few MiB even
    # with embed_dim ~1024 (keeps v7x's 64 MiB VMEM / double-buffer headroom).
    TB = min(1024, _round_up(max(B, 1), 8))
    grid_b = pl.cdiv(B, TB)
    B_pad = grid_b * TB
    if B_pad != B:
        lat = jnp.pad(lat, ((0, B_pad - B), (0, 0)))
        lon = jnp.pad(lon, ((0, B_pad - B), (0, 0)))

    cost = pl.CostEstimate(
        flops=5 * B_pad * embed_dim,                        # muls/adds per element
        transcendentals=B_pad * embed_dim,                  # one sin per element
        bytes_accessed=4 * (2 * B_pad + B_pad * embed_dim + 3 * embed_dim))

    out = pl.pallas_call(
        functools.partial(_loc_enc_kernel, scale=scale_val),
        out_shape=jax.ShapeDtypeStruct((B_pad, embed_dim), jnp.float32),
        grid=(grid_b,),
        in_specs=[
            pl.BlockSpec((TB, 1), lambda i: (i, 0)),            # lat
            pl.BlockSpec((TB, 1), lambda i: (i, 0)),            # lon
            pl.BlockSpec((1, embed_dim), lambda i: (0, 0)),     # w_lat (broadcast)
            pl.BlockSpec((1, embed_dim), lambda i: (0, 0)),     # w_lon (broadcast)
            pl.BlockSpec((1, embed_dim), lambda i: (0, 0)),     # phase (broadcast)
        ],
        out_specs=pl.BlockSpec((TB, embed_dim), lambda i: (i, 0)),
        compiler_params=pltpu.CompilerParams(
            dimension_semantics=("parallel",)),                 # v7x: 2 TCs
        cost_estimate=cost,
    )(lat, lon, w_lat, w_lon, phase)

    # PyTorch reshapes each part to (B, 1, -1) and concatenates on last dim.
    return out[:B].reshape(B, 1, embed_dim)


# ----------------------------------------------------------------------------
# Pure-NumPy reference (mirrors the PyTorch code path exactly)
# ----------------------------------------------------------------------------
def _ref_1d_sincos(embed_dim_part, pos):
    half = embed_dim_part // 2
    omega = np.arange(half, dtype=np.float32) / (embed_dim_part / 2.0)
    omega = 1.0 / (10000.0 ** omega)
    out = pos.reshape(-1)[:, None] * omega[None, :]
    return np.concatenate([np.sin(out), np.cos(out)], axis=1)


def _ref_location_encoder(coords, embed_dim, trainable_scale=False):
    coords = np.asarray(coords, np.float32)
    B = coords.shape[0]
    lat_d = embed_dim // 2
    lon_d = embed_dim - lat_d
    lat = _ref_1d_sincos(lat_d, coords[:, 0]).reshape(B, 1, -1)
    lon = _ref_1d_sincos(lon_d, coords[:, 1]).reshape(B, 1, -1)
    scale = 0.1 if trainable_scale else 1.0
    return scale * np.concatenate([lat, lon], axis=-1)


# ----------------------------------------------------------------------------
if __name__ == "__main__":
    key = jax.random.PRNGKey(0)
    B = 2
    EMBED_DIM = 32  # lat_embed_dim = lon_embed_dim = 16 (each even, as required)

    # lat in [-90, 90], lon in [-180, 180]
    k1, k2 = jax.random.split(key)
    lat = jax.random.uniform(k1, (B, 1), minval=-90.0, maxval=90.0)
    lon = jax.random.uniform(k2, (B, 1), minval=-180.0, maxval=180.0)
    location_coords = jnp.concatenate([lat, lon], axis=-1)  # (B, 2)

    # Tolerance note: cos is computed as sin(x + pi/2); at |angle| up to ~180 rad
    # the rounded +pi/2 adds a few-ulp angle perturbation, so allow atol=5e-5.
    out = location_encoder(location_coords, EMBED_DIM, trainable_scale=False)
    out = jax.block_until_ready(out)
    ref = _ref_location_encoder(np.asarray(location_coords), EMBED_DIM,
                                trainable_scale=False)
    assert out.shape == (B, 1, EMBED_DIM), out.shape
    np.testing.assert_allclose(np.asarray(out), ref, rtol=1e-5, atol=5e-5)

    # trainable_scale=True path (scale=0.1 baked at trace time).
    out_s = location_encoder(location_coords, EMBED_DIM, trainable_scale=True)
    out_s = jax.block_until_ready(out_s)
    ref_s = _ref_location_encoder(np.asarray(location_coords), EMBED_DIM,
                                  trainable_scale=True)
    np.testing.assert_allclose(np.asarray(out_s), ref_s, rtol=1e-5, atol=5e-5)

    print("KERNEL_OK")
</pallas_src>

<mosaic_0001>
module attributes {stable_mosaic.version = 11 : i64} {
  func.func @_loc_enc_kernel(%arg0: i32, %arg1: memref<8x1xf32, #tpu.memory_space<vmem>>, %arg2: memref<8x1xf32, #tpu.memory_space<vmem>>, %arg3: memref<1x32xf32, #tpu.memory_space<vmem>>, %arg4: memref<1x32xf32, #tpu.memory_space<vmem>>, %arg5: memref<1x32xf32, #tpu.memory_space<vmem>>, %arg6: memref<8x32xf32, #tpu.memory_space<vmem>>) attributes {dimension_semantics = [#tpu.dimension_semantics<parallel>], iteration_bounds = array<i64: 1>, scalar_prefetch = 0 : i64, scratch_operands = 0 : i64, tpu.core_type = #tpu.core_type<tc>, window_params = [{transform_indices = @transform_0, window_bounds = array<i64: 8, 1>}, {transform_indices = @transform_1, window_bounds = array<i64: 8, 1>}, {pipeline_mode = #tpu.pipeline_mode<synchronous>, transform_indices = @transform_2, window_bounds = array<i64: 1, 32>}, {pipeline_mode = #tpu.pipeline_mode<synchronous>, transform_indices = @transform_3, window_bounds = array<i64: 1, 32>}, {pipeline_mode = #tpu.pipeline_mode<synchronous>, transform_indices = @transform_4, window_bounds = array<i64: 1, 32>}, {transform_indices = @transform_5, window_bounds = array<i64: 8, 32>}]} {
    %c0 = arith.constant 0 : index
    %c0_0 = arith.constant 0 : index
    %0 = vector.load %arg1[%c0, %c0_0] : memref<8x1xf32, #tpu.memory_space<vmem>>, vector<8x1xf32>
    %c0_1 = arith.constant 0 : index
    %c0_2 = arith.constant 0 : index
    %1 = vector.load %arg3[%c0_1, %c0_2] : memref<1x32xf32, #tpu.memory_space<vmem>>, vector<1x32xf32>
    %2 = vector.broadcast %0 : vector<8x1xf32> to vector<8x32xf32>
    %3 = vector.broadcast %1 : vector<1x32xf32> to vector<8x32xf32>
    %4 = arith.mulf %2, %3 : vector<8x32xf32>
    %c0_3 = arith.constant 0 : index
    %c0_4 = arith.constant 0 : index
    %5 = vector.load %arg2[%c0_3, %c0_4] : memref<8x1xf32, #tpu.memory_space<vmem>>, vector<8x1xf32>
    %c0_5 = arith.constant 0 : index
    %c0_6 = arith.constant 0 : index
    %6 = vector.load %arg4[%c0_5, %c0_6] : memref<1x32xf32, #tpu.memory_space<vmem>>, vector<1x32xf32>
    %7 = vector.broadcast %5 : vector<8x1xf32> to vector<8x32xf32>
    %8 = vector.broadcast %6 : vector<1x32xf32> to vector<8x32xf32>
    %9 = arith.mulf %7, %8 : vector<8x32xf32>
    %10 = arith.addf %4, %9 : vector<8x32xf32>
    %c0_7 = arith.constant 0 : index
    %c0_8 = arith.constant 0 : index
    %11 = vector.load %arg5[%c0_7, %c0_8] : memref<1x32xf32, #tpu.memory_space<vmem>>, vector<1x32xf32>
    %12 = vector.broadcast %11 : vector<1x32xf32> to vector<8x32xf32>
    %13 = arith.addf %10, %12 : vector<8x32xf32>
    %14 = math.sin %13 : vector<8x32xf32>
    %c0_9 = arith.constant 0 : index
    %c0_10 = arith.constant 0 : index
    %15 = vector.load %arg6[%c0_9, %c0_10] : memref<8x32xf32, #tpu.memory_space<vmem>>, vector<8x32xf32>
    tpu.vector_store %arg6[%c0_9, %c0_10], %14 {strides = array<i32>} : memref<8x32xf32, #tpu.memory_space<vmem>>, vector<8x32xf32>,
    return
  }
  func.func @transform_0(%arg0: i32) -> (i32, i32) {
    %c0_i32 = arith.constant 0 : i32
    %c0_i32_0 = arith.constant 0 : i32
    return %arg0, %c0_i32 : i32, i32
  }
  func.func @transform_1(%arg0: i32) -> (i32, i32) {
    %c0_i32 = arith.constant 0 : i32
    %c0_i32_0 = arith.constant 0 : i32
    return %arg0, %c0_i32 : i32, i32
  }
  func.func @transform_2(%arg0: i32) -> (i32, i32) {
    %c0_i32 = arith.constant 0 : i32
    %c0_i32_0 = arith.constant 0 : i32
    %c0_i32_1 = arith.constant 0 : i32
    return %c0_i32, %c0_i32_0 : i32, i32
  }
  func.func @transform_3(%arg0: i32) -> (i32, i32) {
    %c0_i32 = arith.constant 0 : i32
    %c0_i32_0 = arith.constant 0 : i32
    %c0_i32_1 = arith.constant 0 : i32
    return %c0_i32, %c0_i32_0 : i32, i32
  }
  func.func @transform_4(%arg0: i32) -> (i32, i32) {
    %c0_i32 = arith.constant 0 : i32
    %c0_i32_0 = arith.constant 0 : i32
    %c0_i32_1 = arith.constant 0 : i32
    return %c0_i32, %c0_i32_0 : i32, i32
  }
  func.func @transform_5(%arg0: i32) -> (i32, i32) {
    %c0_i32 = arith.constant 0 : i32
    %c0_i32_0 = arith.constant 0 : i32
    return %arg0, %c0_i32 : i32, i32
  }
}

</mosaic_0001>

<llo_original>
// kernel: tpu_custom_call.1
$region0: #{tpu_custom_call.1}
  #allocation0 [shape = 'u32[]', space=smem, size = 0x4, offset = 0x4, fixed_abs, tag = 'smem constant byte address 0x4 - core index']
  #allocation1 [shape = 'u32[144,128]{1,0:T(1,128)}', space=vmem, size = 0x12000, scoped, tag = 'internal scratch']
  %s0 = inlined_call_operand.vmem [shape: f32[8,1], index: 0, kind: input, shape index: {}]
  %s1 = inlined_call_operand.vmem [shape: f32[8,1], index: 1, kind: input, shape index: {}]
  %s2 = inlined_call_operand.vmem [shape: f32[1,32], index: 2, kind: input, shape index: {}]
  %s3 = inlined_call_operand.vmem [shape: f32[1,32], index: 3, kind: input, shape index: {}]
  %s4 = inlined_call_operand.vmem [shape: f32[1,32], index: 4, kind: input, shape index: {}]
  %s5 = inlined_call_operand.hbm [shape: f32[8,32], index: 5, kind: output, shape index: {}]
  %s6 = sld [smem:[#allocation0]]
  $region30: #{tpu_custom_call.1} parent=0
    _
  %s8 = ssub.s32 1, %s6
  %s9 = scalar_select 0, %s8, %s6
  $region1: #{tpu_custom_call.1} parent=0
    #allocation2 [shape = 'u8[4096]{0}', space=vmem, size = 0x1000, scoped, tag = 'output window, operand 0, single buffered']
    #allocation3 [shape = 's32[1]{0}', space=sflag, size = 0x4, scoped, tag = 'scoped memory for tpu_custom_call.1']
    %10 = vsyncpa [#allocation3], 0
    // Predicated region
    $region2: #{tpu_custom_call.1} parent=1 // pred_check
      _
    $region3: #{tpu_custom_call.1} parent=1 // pred_check_branch
      %12 = sbr.rel (0) target = $region5
    $region4: #{tpu_custom_call.1} parent=1 // pred_region
      _
    $region5: #{tpu_custom_call.1} parent=1 // pred_fallthru
      _
    // Predicated region
    $region6: #{tpu_custom_call.1} parent=1 // pred_check
      _
    $region7: #{tpu_custom_call.1} parent=1 // pred_check_branch
      %14 = sbr.rel (0) target = $region9
    $region8: #{tpu_custom_call.1} parent=1 // pred_region
      _
    $region9: #{tpu_custom_call.1} parent=1 // pred_fallthru
      _
    // Predicated region
    $region10: #{tpu_custom_call.1} parent=1 // pred_check
      _
    $region11: #{tpu_custom_call.1} parent=1 // pred_check_branch
      %16 = sbr.rel (0) target = $region13
    $region12: #{tpu_custom_call.1} parent=1 // pred_region
      _
    $region13: #{tpu_custom_call.1} parent=1 // pred_fallthru
      _
    // Predicated region
    $region14: #{tpu_custom_call.1} parent=1 // pred_check
      _
    $region15: #{tpu_custom_call.1} parent=1 // pred_check_branch
      %18 = sbr.rel (0) target = $region17
    $region16: #{tpu_custom_call.1} parent=1 // pred_region
      _
    $region17: #{tpu_custom_call.1} parent=1 // pred_fallthru
      _
    // Predicated region
    $region18: #{tpu_custom_call.1} parent=1 // pred_check
      _
    $region19: #{tpu_custom_call.1} parent=1 // pred_check_branch
      %20 = sbr.rel (0) target = $region21
    $region20: #{tpu_custom_call.1} parent=1 // pred_region
      _
    $region21: #{tpu_custom_call.1} parent=1 // pred_fallthru
      _
    %v21 = vld [vmem:[%s0] sm:$0xff]
    %v22 = vld [vmem:[%s2] sm:$0x1]
    %24 = vset.pattern.permute.xlu0 0
    %25 = vperm.xlu0 %24, %v21
    %v26 = vpop.permute.xlu0 %25
    %v29 = vlaneseq
    %v30 = vshrl.u32 %v29, 7
    %v31 = vsub.s32 0, %v30
    %v32 = vrot.slane %v22, %v31
    %v34 = vmul.f32 %v26, %v32
    %v35 = vld [vmem:[%s1] sm:$0xff]
    %v36 = vld [vmem:[%s3] sm:$0x1]
    %38 = vset.pattern.permute.xlu0 0
    %39 = vperm.xlu0 %38, %v35
    %v40 = vpop.permute.xlu0 %39
    %v43 = vlaneseq
    %v44 = vshrl.u32 %v43, 7
    %v45 = vsub.s32 0, %v44
    %v46 = vrot.slane %v36, %v45
    %v48 = vmul.f32 %v40, %v46
    %v49 = vadd.f32 %v34, %v48
    %v50 = vld [vmem:[%s4] sm:$0x1]
    %v52 = vlaneseq
    %v53 = vshrl.u32 %v52, 7
    %v54 = vsub.s32 0, %v53
    %v55 = vrot.slane %v50, %v54
    %v57 = vadd.f32 %v49, %v55
    %v58 = vand.u32 2147483647, %v57
    %vm59 = vcmp.le.f32.partialorder %v58, 0.7853982
    %vm60 = vcmp.lt.s32.totalorder %v57, 0
    %v61 = vand.u32 %v57, 2139095040
    %v62 = vshrl.u32 %v61, 23
    %v63 = vsub.s32 %v62, 127
    %v64 = vand.u32 2147483647, %v57
    %v65 = vand.u32 %v64, 8388607
    %v66 = vor.u32 %v65, 8388608
    %v67 = vsub.s32 0, %v66
    %v68 = vadd.s32 %v63, 1
    %vm69 = vcmp.gt.s32.totalorder %v68, 0
    %v70 = vsel %vm69, %v68, 0
    %v71 = vshrl.u32 %v70, 5
    %v72 = vand.u32 %v70, 31
    %v73 = vsub.s32 32, %v72
    %v74 = vshrl.u32 683565275, %v73
    %v75 = vshll.u32 683565275, %v72
    %v76 = vshrl.u32 2475754826, %v73
    %v77 = vor.u32 %v75, %v76
    %v78 = vshll.u32 2475754826, %v72
    %v79 = vshrl.u32 2131351028, %v73
    %v80 = vor.u32 %v78, %v79
    %v81 = vshll.u32 2131351028, %v72
    %v82 = vshrl.u32 2102212464, %v73
    %v83 = vor.u32 %v81, %v82
    %v84 = vshll.u32 2102212464, %v72
    %v85 = vshrl.u32 920167782, %v73
    %v86 = vor.u32 %v84, %v85
    %v87 = vshll.u32 920167782, %v72
    %v88 = vshrl.u32 1326507024, %v73
    %v89 = vor.u32 %v87, %v88
    %vm90 = vcmp.lt.s32.totalorder %v71, 1
    %vm91 = vcmp.lt.s32.totalorder %v71, 2
    %vm92 = vcmp.lt.s32.totalorder %v71, 3
    %vm93 = vcmp.lt.s32.totalorder %v71, 4
    %v94 = vsel %vm90, %v74, %v77
    %v95 = vsel %vm93, %v83, 2102212464
    %v96 = vsel %vm92, %v80, %v95
    %v97 = vsel %vm91, %v94, %v96
    %v98 = vsel %vm90, %v77, %v80
    %v99 = vsel %vm93, %v86, 920167782
    %v100 = vsel %vm92, %v83, %v99
    %v101 = vsel %vm91, %v98, %v100
    %v102 = vsel %vm90, %v80, %v83
    %v103 = vsel %vm93, %v89, 1326507024
    %v104 = vsel %vm92, %v86, %v103
    %v105 = vsel %vm91, %v102, %v104
    %v106 = vshll.u32 %v66, 8
    %v107 = vmul.u32.u64.compose %v106, %v105
    %v108 = vextract.low.u32 %v107
    %v109 = vextract.high.u32 %v107
    %v110 = vmul.u32.u64.compose %v106, %v101
    %v111 = vextract.low.u32 %v110
    %v112 = vextract.high.u32 %v110
    %v113 = vmul.u32 %v106, %v97
    %v114 = vadd.s32 %v109, %v111
    %vm115 = vc.u32 %v109, %v111
    %v116 = vadd.s32 %v112, 1
    %v117 = vsel %vm115, %v116, %v112
    %v118 = vadd.s32 %v113, %v117
    %v119 = vadd.s32 %v118, 536870912
    %v120 = vshrl.u32 %v119, 30
    %v121 = vshll.u32 %v120, 30
    %v122 = vsub.s32 %v118, %v121
    %vm123 = vcmp.lt.s32.totalorder %v122, 0
    %v124 = vsub.s32 0, %v122
    %v125 = vsel %vm123, %v124, %v122
    %v126 = vclz %v125
    %v127 = vsub.s32 %v126, 2
    %vm128 = vcmp.gt.s32.totalorder 0, %v127
    %v129 = vsel %vm128, 0, %v127
    %v130 = vsub.s32 32, %v129
    %v131 = vshll.u32 %v122, %v129
    %v132 = vshrl.u32 %v114, %v130
    %v133 = vor.u32 %v131, %v132
    %v134 = vsub.s32 4294967266, %v129
    %v135 = vadd.s32 %v134, 127
    %v136 = vshll.u32 %v135, 23
    %v137 = vor.u32 4788187, %v136
    %v138 = vand.u32 2147483647, %v137
    %v140 = vcvt.s32.f32 %v133
    %v141 = vmul.f32 %v140, %v138
    %v142 = vxor.u32 %v141, 2147483648
    %v143 = vsel %vm60, %v142, %v141
    %v144 = vsub.s32 4, %v120
    %v145 = vsel %vm60, %v144, %v120
    %v146 = vsel %vm59, %v57, %v143
    %v147 = vsel %vm59, 0, %v145
    %v148 = vcosq.f32.pop %v146
    %v149 = vsinq.f32.pop %v146
    %vm150 = vweird.f32 %v57
    %v151 = vadd.s32 %v147, 3
    %v152 = vand.u32 %v151, 3
    %vm153 = vcmp.lt.s32.totalorder %v152, 2
    %vm154 = vcmp.eq.s32.totalorder %v152, 0
    %v155 = vxor.u32 %v149, 2147483648
    %v156 = vsel %vm154, %v148, %v155
    %vm157 = vcmp.eq.s32.totalorder %v152, 2
    %v158 = vxor.u32 %v148, 2147483648
    %v159 = vsel %vm157, %v158, %v149
    %v160 = vsel %vm153, %v156, %v159
    %v161 = vsel %vm150, nan, %v160
    %vm162 = vcmask 261120
    %163 = vst.msk [vmem:[#allocation2] sm:$0xff] %vm162, %v161
    // Predicated region
    $region22: #{tpu_custom_call.1} parent=1 // pred_check
      _
    $region23: #{tpu_custom_call.1} parent=1 // pred_check_branch
      %165 = sbr.rel (0) target = $region25
    $region24: #{tpu_custom_call.1} parent=1 // pred_region
      %s167 = ssub.s32 128, 128
      %168 = vsyncadd [#allocation3], %s167
      %s170 = sshll.u32 [#allocation2], 4
      %s171 = int_to_ptr.vmem [resolvable:$true] %s170
      %173 = dma.vmem_to_hbm [thread:$0]  %s171, 128, %s5, [#allocation3]
    $region25: #{tpu_custom_call.1} parent=1 // pred_fallthru
      _
    // Predicated region
    $region26: #{tpu_custom_call.1} parent=1 // pred_check
      _
    $region27: #{tpu_custom_call.1} parent=1 // pred_check_branch
      %175 = sbr.rel (0) target = $region29
    $region28: #{tpu_custom_call.1} parent=1 // pred_region
      %176 = dma.done [#allocation3], 128
    $region29: #{tpu_custom_call.1} parent=1 // pred_fallthru
      _
    %177 = vsyncpa [#allocation3], 1

</llo_original>
